<compile_context>
chip_gen: v7x
topology: tpu7x:2x2x1
jax: 0.10.0
libtpu: 0.0.40
codegen_flags: <defaults>
</compile_context>

<pallas_src>
import functools
import math

import jax
import jax.numpy as jnp
from jax.experimental import pallas as pl
from jax.experimental.pallas import tpu as pltpu


_LANE = 128                    # TPU vreg lane width
_SUBLANE = 8                   # TPU vreg sublane count (f32)
_MAX_BLOCK_BYTES = 8 << 20     # ~8 MiB per x/out block (dtype-aware in elems)
_SMALL_BYPASS_BYTES = 256 << 10


def _add_pe_kernel(pe_ref, x_ref, o_ref):
    # pe_ref: (1, TL); x_ref / o_ref: (TB, TL). Same dtype everywhere
    # (pe pre-cast in the wrapper) -> pure VPU add with sublane broadcast.
    o_ref[...] = x_ref[...] + pe_ref[...]


@functools.lru_cache(maxsize=16)
def make_positional_encoding(seq_len: int, d_model: int) -> jax.Array:
    """(seq_len, d_model) f32 table; identical math to the PyTorch buffer."""
    if d_model % 2 != 0:
        # Same latent limitation as the common PyTorch recipe; fail loudly.
        raise ValueError(f"d_model must be even, got {d_model}")
    position = jnp.arange(seq_len, dtype=jnp.float32)[:, None]              # (S, 1)
    div_term = jnp.exp(jnp.arange(0, d_model, 2, dtype=jnp.float32)
                       * (-math.log(10000.0) / d_model))                    # (D/2,)
    pe = jnp.zeros((seq_len, d_model), dtype=jnp.float32)
    pe = pe.at[:, 0::2].set(jnp.sin(position * div_term))
    pe = pe.at[:, 1::2].set(jnp.cos(position * div_term))
    return pe


def _round_up(x: int, m: int) -> int:
    return ((x + m - 1) // m) * m


def _vmem_capacity_bytes() -> int:
    """Physical per-core VMEM; conservative 64 MiB fallback (v7x)."""
    try:
        return int(pltpu.get_tpu_info().vmem_capacity_bytes)
    except Exception:
        return 64 << 20


def _vmem_limit_bytes() -> int:
    cap = _vmem_capacity_bytes()
    # 48 MiB on v7x (64 MiB physical), 64 MiB on v5e/v6e (128 MiB physical).
    return int(max(32 << 20, min(cap - (16 << 20), 64 << 20)))


def _choose_tiles(batch: int, lanes: int, itemsize: int):
    """Pick (batch_tile, lane_tile) obeying TPU block rules and the VMEM budget."""
    max_block_elems = max(_LANE * _SUBLANE, _MAX_BLOCK_BYTES // itemsize)
    # Packed-sublane multiple: 8 for f32, 16 for bf16/f16, 32 for int8/fp8.
    sub_mult = max(_SUBLANE, (4 // itemsize) * _SUBLANE)

    # Lane tile: full extent when it fits (always legal); otherwise balanced
    # 128-multiples so every grid step moves the same amount of data.
    max_tl = max(_LANE, ((max_block_elems // sub_mult) // _LANE) * _LANE)
    if lanes <= max_tl:
        tl = lanes
    else:
        n_lane_tiles = pl.cdiv(lanes, max_tl)
        tl = min(max_tl, _round_up(pl.cdiv(lanes, n_lane_tiles), _LANE))

    # Batch tile: full extent when it fits (always legal); otherwise a multiple
    # of the packed-sublane count so loads/stores stay unmasked.
    max_tb = max(1, max_block_elems // tl)
    if batch <= max_tb:
        tb = batch
    else:
        tb = max(sub_mult, (max_tb // sub_mult) * sub_mult)
    return tb, tl


def positional_encoding_forward(x: jax.Array, pe=None, *, force_pallas: bool = False) -> jax.Array:
    """x: (B, S, D). Returns x + pe[:S] broadcast over the batch dimension."""
    B, S, D = x.shape
    if pe is None:
        pe = make_positional_encoding(S, D)
    else:
        pe = jnp.asarray(pe)
        if pe.ndim != 2 or pe.shape[0] < S or pe.shape[1] != D:
            raise ValueError(
                f"pe must have shape (>= {S}, {D}); got {tuple(pe.shape)}")
    # Pre-cast once in the wrapper (for f32 x this is a no-op and matches
    # PyTorch exactly; for bf16 x we stay in bf16 rather than promoting).
    pe = pe[:S].astype(x.dtype)

    itemsize = jnp.dtype(x.dtype).itemsize
    L = S * D

    # Tiny-shape bypass: launch + single-grid-step overhead would dominate;
    # plain XLA fuses the add into neighbors for free.
    if not force_pallas and B * L * itemsize < _SMALL_BYPASS_BYTES:
        return x + pe[None, :, :]

    x2 = x.reshape(B, L)        # lane-dense view: last dim = S*D
    pe2 = pe.reshape(1, L)

    tb, tl = _choose_tiles(B, L, itemsize)
    grid = (pl.cdiv(L, tl), pl.cdiv(B, tb))   # batch innermost -> pe tile stays resident

    out2 = pl.pallas_call(
        _add_pe_kernel,
        out_shape=jax.ShapeDtypeStruct((B, L), x.dtype),
        grid_spec=pltpu.PrefetchScalarGridSpec(
            num_scalar_prefetch=0,
            grid=grid,
            in_specs=[
                # PE: block index depends only on the lane tile -> no re-DMA
                # across the inner batch sweep (VMEM-resident broadcast operand).
                pl.BlockSpec((1, tl), lambda l, b: (0, l)),
                pl.BlockSpec((tb, tl), lambda l, b: (b, l)),
            ],
            out_specs=pl.BlockSpec((tb, tl), lambda l, b: (b, l)),
        ),
        compiler_params=pltpu.CompilerParams(
            dimension_semantics=("parallel", "parallel"),
            vmem_limit_bytes=_vmem_limit_bytes(),
        ),
        cost_estimate=pl.CostEstimate(
            flops=B * L,
            transcendentals=0,
            bytes_accessed=(2 * B * L + L) * itemsize,
        ),
    )(pe2, x2)

    return out2.reshape(B, S, D)


def _reference(x: jax.Array) -> jax.Array:
    """Pure-JAX reference matching the kernel (and PyTorch for f32)."""
    B, S, D = x.shape
    pe = make_positional_encoding(S, D).astype(x.dtype)
    return x + pe[None, :, :]


if __name__ == "__main__":
    key = jax.random.PRNGKey(0)

    # Small shape implied by the module's forward: (batch=2, seq=8, d_model=32).
    # force_pallas=True so the tiny-shape bypass doesn't skip the kernel here.
    B, S, D = 2, 8, 32
    x = jax.random.normal(key, (B, S, D), dtype=jnp.float32)
    ref = _reference(x)
    out = jax.block_until_ready(positional_encoding_forward(x, force_pallas=True))
    assert out.shape == (B, S, D)
    assert out.dtype == x.dtype
    assert jnp.allclose(out, ref, atol=1e-5, rtol=1e-5), "mismatch vs reference (small)"

    # Larger f32 shape exercising the multi-tile path (lane tiles and batch tiles).
    B2, S2, D2 = 16, 2048, 512
    xb = jax.random.normal(jax.random.PRNGKey(1), (B2, S2, D2), dtype=jnp.float32)
    refb = _reference(xb)
    outb = jax.block_until_ready(positional_encoding_forward(xb))
    assert jnp.allclose(outb, refb, atol=1e-5, rtol=1e-5), "mismatch vs reference (tiled f32)"

    # bf16 shape exercising the dtype-aware tile sizing and pre-cast pe path.
    B3, S3, D3 = 4, 256, 128
    xc = jax.random.normal(jax.random.PRNGKey(2), (B3, S3, D3), dtype=jnp.bfloat16)
    refc = _reference(xc)
    outc = jax.block_until_ready(positional_encoding_forward(xc, force_pallas=True))
    assert outc.dtype == jnp.bfloat16
    assert jnp.allclose(outc.astype(jnp.float32), refc.astype(jnp.float32),
                        atol=1e-2, rtol=1e-2), "mismatch vs reference (bf16)"

    print("KERNEL_OK")
</pallas_src>

<mosaic_0001>
module attributes {stable_mosaic.version = 11 : i64} {
  func.func @_add_pe_kernel(%arg0: i32, %arg1: i32, %arg2: memref<1x256xf32, #tpu.memory_space<vmem>>, %arg3: memref<2x256xf32, #tpu.memory_space<vmem>>, %arg4: memref<2x256xf32, #tpu.memory_space<vmem>>) attributes {dimension_semantics = [#tpu.dimension_semantics<parallel>, #tpu.dimension_semantics<parallel>], iteration_bounds = array<i64: 1, 1>, scalar_prefetch = 0 : i64, scratch_operands = 0 : i64, tpu.core_type = #tpu.core_type<tc>, window_params = [{transform_indices = @transform_0, window_bounds = array<i64: 1, 256>}, {transform_indices = @transform_1, window_bounds = array<i64: 2, 256>}, {transform_indices = @transform_2, window_bounds = array<i64: 2, 256>}]} {
    %c0 = arith.constant 0 : index
    %c0_0 = arith.constant 0 : index
    %0 = vector.load %arg3[%c0, %c0_0] : memref<2x256xf32, #tpu.memory_space<vmem>>, vector<2x256xf32>
    %c0_1 = arith.constant 0 : index
    %c0_2 = arith.constant 0 : index
    %1 = vector.load %arg2[%c0_1, %c0_2] : memref<1x256xf32, #tpu.memory_space<vmem>>, vector<1x256xf32>
    %2 = vector.broadcast %1 : vector<1x256xf32> to vector<2x256xf32>
    %3 = arith.addf %0, %2 : vector<2x256xf32>
    %c0_3 = arith.constant 0 : index
    %c0_4 = arith.constant 0 : index
    %4 = vector.load %arg4[%c0_3, %c0_4] : memref<2x256xf32, #tpu.memory_space<vmem>>, vector<2x256xf32>
    tpu.vector_store %arg4[%c0_3, %c0_4], %3 {strides = array<i32>} : memref<2x256xf32, #tpu.memory_space<vmem>>, vector<2x256xf32>,
    return
  }
  func.func @transform_0(%arg0: i32, %arg1: i32) -> (i32, i32) {
    %c0_i32 = arith.constant 0 : i32
    %c0_i32_0 = arith.constant 0 : i32
    return %c0_i32, %arg0 : i32, i32
  }
  func.func @transform_1(%arg0: i32, %arg1: i32) -> (i32, i32) {
    %c0_i32 = arith.constant 0 : i32
    return %arg1, %arg0 : i32, i32
  }
  func.func @transform_2(%arg0: i32, %arg1: i32) -> (i32, i32) {
    %c0_i32 = arith.constant 0 : i32
    return %arg1, %arg0 : i32, i32
  }
}

</mosaic_0001>

<llo_original>
// kernel: tpu_custom_call.1
$region0: #{tpu_custom_call.1}
  #allocation0 [shape = 'u32[]', space=smem, size = 0x4, offset = 0x4, fixed_abs, tag = 'smem constant byte address 0x4 - core index']
  #allocation1 [shape = 'u32[144,128]{1,0:T(1,128)}', space=vmem, size = 0x12000, scoped, tag = 'internal scratch']
  %s0 = inlined_call_operand.hbm [shape: f32[1,256], index: 0, kind: input, shape index: {}]
  %s1 = inlined_call_operand.hbm [shape: f32[2,256], index: 1, kind: input, shape index: {}]
  %s2 = inlined_call_operand.hbm [shape: f32[2,256], index: 2, kind: output, shape index: {}]
  %s3 = sld [smem:[#allocation0]]
  $region26: #{tpu_custom_call.1} parent=0
    _
  %s5 = ssub.s32 1, %s3
  %s6 = scalar_select 0, %s5, %s3
  $region1: #{tpu_custom_call.1} parent=0
    #allocation2 [shape = 'u8[1024]{0}', space=vmem, size = 0x400, scoped, tag = 'input window, operand 0, single buffered']
    #allocation3 [shape = 's32[1]{0}', space=sflag, size = 0x4, scoped, tag = 'scoped memory for tpu_custom_call.1']
    #allocation4 [shape = 's32[1]{0}', space=sflag, size = 0x4, scoped, tag = 'scoped memory for tpu_custom_call.1']
    #allocation5 [shape = 'u8[2048]{0}', space=vmem, size = 0x800, scoped, tag = 'input window, operand 1, single buffered']
    #allocation6 [shape = 's32[1]{0}', space=sflag, size = 0x4, scoped, tag = 'scoped memory for tpu_custom_call.1']
    #allocation7 [shape = 'u8[2048]{0}', space=vmem, size = 0x800, scoped, tag = 'output window, operand 0, single buffered']
    %7 = vsyncpa [#allocation3], 0
    %8 = vsyncpa [#allocation6], 0
    %9 = vsyncpa [#allocation4], 0
    // Predicated region
    $region2: #{tpu_custom_call.1} parent=1 // pred_check
      _
    $region3: #{tpu_custom_call.1} parent=1 // pred_check_branch
      %11 = sbr.rel (0) target = $region5
    $region4: #{tpu_custom_call.1} parent=1 // pred_region
      %s13 = ssub.s32 32, 32
      %14 = vsyncadd [#allocation3], %s13
      %s16 = sshll.u32 [#allocation2], 4
      %s17 = int_to_ptr.vmem [resolvable:$true] %s16
      %19 = dma.hbm_to_vmem [thread:$0]  %s0, 32, %s17, [#allocation3]
    $region5: #{tpu_custom_call.1} parent=1 // pred_fallthru
      _
    // Predicated region
    $region6: #{tpu_custom_call.1} parent=1 // pred_check
      _
    $region7: #{tpu_custom_call.1} parent=1 // pred_check_branch
      %21 = sbr.rel (0) target = $region9
    $region8: #{tpu_custom_call.1} parent=1 // pred_region
      %s23 = ssub.s32 64, 64
      %24 = vsyncadd [#allocation6], %s23
      %s26 = sshll.u32 [#allocation5], 4
      %s27 = int_to_ptr.vmem [resolvable:$true] %s26
      %29 = dma.hbm_to_vmem [thread:$0]  %s1, 64, %s27, [#allocation6]
    $region9: #{tpu_custom_call.1} parent=1 // pred_fallthru
      _
    // Predicated region
    $region10: #{tpu_custom_call.1} parent=1 // pred_check
      _
    $region11: #{tpu_custom_call.1} parent=1 // pred_check_branch
      %31 = sbr.rel (0) target = $region13
    $region12: #{tpu_custom_call.1} parent=1 // pred_region
      %32 = dma.done [#allocation3], 32
    $region13: #{tpu_custom_call.1} parent=1 // pred_fallthru
      _
    // Predicated region
    $region14: #{tpu_custom_call.1} parent=1 // pred_check
      _
    $region15: #{tpu_custom_call.1} parent=1 // pred_check_branch
      %34 = sbr.rel (0) target = $region17
    $region16: #{tpu_custom_call.1} parent=1 // pred_region
      %35 = dma.done [#allocation6], 64
    $region17: #{tpu_custom_call.1} parent=1 // pred_fallthru
      _
    %v36 = vld [vmem:[#allocation5] sm:$0xf]
    %v37 = vld [vmem:[#allocation2] sm:$0x3]
    %v39 = vlaneseq
    %v40 = vshrl.u32 %v39, 7
    %v41 = vsub.s32 0, %v40
    %v42 = vrot.slane %v37, %v41
    %v43 = vlaneseq
    %v44 = vshrl.u32 %v43, 7
    %v45 = vsub.s32 1, %v44
    %v46 = vrot.slane %v37, %v45
    %v47 = vcombine.low %v42, %v46
    %v49 = vunpack.c.l.s4 1983009808
    %v50 = vunpack.c.0.s8 %v49
    %v51 = vlaneseq
    %v52 = vshrl.u32 %v51, 7
    %v53 = vsub.s32 %v50, %v52
    %v54 = vrot.slane %v47, %v53
    %v56 = vadd.f32 %v36, %v54
    %57 = vst [vmem:[#allocation7] sm:$0xf] %v56
    // Predicated region
    $region18: #{tpu_custom_call.1} parent=1 // pred_check
      _
    $region19: #{tpu_custom_call.1} parent=1 // pred_check_branch
      %59 = sbr.rel (0) target = $region21
    $region20: #{tpu_custom_call.1} parent=1 // pred_region
      %s61 = ssub.s32 64, 64
      %62 = vsyncadd [#allocation4], %s61
      %s64 = sshll.u32 [#allocation7], 4
      %s65 = int_to_ptr.vmem [resolvable:$true] %s64
      %67 = dma.vmem_to_hbm [thread:$0]  %s65, 64, %s2, [#allocation4]
    $region21: #{tpu_custom_call.1} parent=1 // pred_fallthru
      _
    // Predicated region
    $region22: #{tpu_custom_call.1} parent=1 // pred_check
      _
    $region23: #{tpu_custom_call.1} parent=1 // pred_check_branch
      %69 = sbr.rel (0) target = $region25
    $region24: #{tpu_custom_call.1} parent=1 // pred_region
      %70 = dma.done [#allocation4], 64
    $region25: #{tpu_custom_call.1} parent=1 // pred_fallthru
      _
    %71 = vsyncpa [#allocation3], 1
    %72 = vsyncpa [#allocation6], 1
    %73 = vsyncpa [#allocation4], 1

</llo_original>
